<compile_context>
chip_gen: v7x
topology: tpu7x:2x2x1
jax: 0.10.0
libtpu: 0.0.40
codegen_flags: <defaults>
</compile_context>

<pallas_src>
import functools

import jax
import jax.numpy as jnp
from jax.experimental import pallas as pl
from jax.experimental.pallas import tpu as pltpu


# ----------------------------------------------------------------- helpers --
def _round_up(x, m):
    return ((x + m - 1) // m) * m


def _cdiv(a, b):
    return -(-a // b)


def _vmem_capacity_bytes():
    try:
        return int(pltpu.get_tpu_info().vmem_capacity_bytes)
    except Exception:
        return 64 * 1024 * 1024  # conservative: v7x per-TC VMEM


# ------------------------------------------------------------------- kernel --
def ffn_swiglu_kernel(x_ref, wg_ref, bg_ref, wo_ref, bo_ref, o_ref, acc_ref):
    """One (row-tile i, hidden-tile j) step of the fused SwiGLU FFN."""
    j = pl.program_id(1)
    tf = wo_ref.shape[0]

    @pl.when(j == 0)
    def _init():
        acc_ref[...] = jnp.zeros_like(acc_ref)

    # x arrives in its original dtype; cast in-register for the MXU.
    x = x_ref[...].astype(wg_ref.dtype)          # (tm, D)
    wg = wg_ref[...]                             # (D, 2*tf)  [Wf^T | Wa^T] tile

    # Single MXU matmul covering both fc and fc_act, f32 accumulation.
    ha = jnp.dot(x, wg, preferred_element_type=jnp.float32)      # (tm, 2*tf)
    ha = ha + bg_ref[...].astype(jnp.float32)                    # bias (1, 2*tf)
    h = ha[:, :tf]
    a = ha[:, tf:]
    g = h * (a * jax.nn.sigmoid(a))              # SwiGLU gate in f32 (EUP sigmoid)

    # Output matmul; hidden dim reduced across grid axis 1 into a VMEM acc.
    acc_ref[...] += jnp.dot(g.astype(wo_ref.dtype), wo_ref[...],
                            preferred_element_type=jnp.float32)

    @pl.when(j == pl.num_programs(1) - 1)
    def _finalize():
        o_ref[...] = (acc_ref[...]
                      + bo_ref[...].astype(jnp.float32)).astype(o_ref.dtype)


# ----------------------------------------------------- one-time weight pack --
def pack_ffn_swiglu_params(wf, bf, wa, ba, wo, bo, *, block_f=None,
                           compute_dtype=jnp.bfloat16):
    """One-time weight repack; do this at parameter load time, NOT per forward.

    PyTorch nn.Linear layout in:  wf, wa: (F, D);  wo: (D, F);
    biases bf, ba: (F,);  bo: (D,).

    Returns a dict of lane-dense, per-hidden-tile packed arrays:
      w_gate: (nf, D, 2*tf) bf16   [Wf^T tile | Wa^T tile]
      b_gate: (nf, 1, 2*tf) f32
      wo_t:   (F_pad, D)    bf16
      bo:     (1, D)        f32
    """
    F, D = wf.shape

    if block_f is None:
        tf = min(_round_up(F, 128), 512)
        # Keep the double-buffered weight working set modest (fits v7x 64 MiB).
        while tf > 128 and 12 * D * tf > 24 * 1024 * 1024:
            tf -= 128
    else:
        tf = _round_up(block_f, 8)

    F_pad = _round_up(F, tf)
    nf = F_pad // tf
    pad_f = F_pad - F

    wf_t = jnp.pad(wf, ((0, pad_f), (0, 0))).T.reshape(D, nf, tf)
    wa_t = jnp.pad(wa, ((0, pad_f), (0, 0))).T.reshape(D, nf, tf)
    w_gate = jnp.concatenate([wf_t, wa_t], axis=-1).transpose(1, 0, 2)  # (nf,D,2tf)
    b_gate = jnp.concatenate(
        [jnp.pad(bf, (0, pad_f)).reshape(nf, 1, tf),
         jnp.pad(ba, (0, pad_f)).reshape(nf, 1, tf)], axis=-1)          # (nf,1,2tf)
    wo_t = jnp.pad(wo, ((0, 0), (0, pad_f))).T                          # (F_pad, D)

    return dict(
        w_gate=w_gate.astype(compute_dtype),
        b_gate=b_gate.astype(jnp.float32),
        wo_t=wo_t.astype(compute_dtype),
        bo=bo.reshape(1, D).astype(jnp.float32),
    )


# ------------------------------------------------------------------ forward --
def ffn_swiglu(x, params, *, block_m=None):
    """FFNSwiGLU forward using pre-packed params (see pack_ffn_swiglu_params)."""
    w_gate = params["w_gate"]
    b_gate = params["b_gate"]
    wo_t = params["wo_t"]
    bo = params["bo"]

    nf, D, two_tf = w_gate.shape
    tf = two_tf // 2
    F_pad = wo_t.shape[0]

    orig_shape = x.shape
    assert orig_shape[-1] == D, (orig_shape, D)
    x2 = x.reshape(-1, D)
    M = x2.shape[0]

    x_bytes = x2.dtype.itemsize
    out_bytes = x2.dtype.itemsize
    w_bytes = w_gate.dtype.itemsize

    cap = _vmem_capacity_bytes()
    budget = int(cap * 0.70)

    def vmem_use(tm_):
        return (2 * tm_ * D * x_bytes          # x blocks (double-buffered)
                + 2 * tm_ * D * out_bytes      # out blocks (double-buffered)
                + tm_ * D * 4                  # f32 accumulator scratch
                + 2 * D * two_tf * w_bytes     # w_gate blocks (double-buffered)
                + 2 * tf * D * w_bytes         # wo blocks (double-buffered)
                + 16 * tm_ * tf                # f32 intermediates (ha, gate)
                + (2 << 20))                   # misc headroom

    if block_m is None:
        # Large row tile -> weights re-streamed fewer times (intensity = tm).
        tm = min(512, _round_up(M, 8))
        # Keep both TensorCores busy on the "parallel" row axis when possible.
        if M > 256 and _cdiv(M, tm) < 2:
            tm = _round_up(_cdiv(M, 2), 8)
        # Shrink tm only if the generation's VMEM budget can't hold it.
        while tm > 128 and vmem_use(tm) > budget:
            tm -= 128
        while tm > 8 and vmem_use(tm) > budget:
            tm = max(8, (tm // 16) * 8)
    else:
        tm = min(_round_up(block_m, 8), _round_up(M, 8))

    M_pad = _round_up(M, tm)
    if M_pad != M:
        x2 = jnp.pad(x2, ((0, M_pad - M), (0, 0)))
    nm = M_pad // tm

    cost = pl.CostEstimate(
        flops=int(6 * M_pad * D * F_pad),
        transcendentals=int(M_pad * F_pad),
        bytes_accessed=int(M_pad * D * (x_bytes + out_bytes)
                           + nm * (w_gate.size + wo_t.size) * w_bytes),
    )

    out = pl.pallas_call(
        ffn_swiglu_kernel,
        out_shape=jax.ShapeDtypeStruct((M_pad, D), x.dtype),
        grid_spec=pltpu.PrefetchScalarGridSpec(
            num_scalar_prefetch=0,
            grid=(nm, nf),
            in_specs=[
                pl.BlockSpec((tm, D), lambda i, j: (i, 0)),                      # x rows
                pl.BlockSpec((pl.Squeezed(), D, 2 * tf), lambda i, j: (j, 0, 0)),  # Wf|Wa
                pl.BlockSpec((pl.Squeezed(), 1, 2 * tf), lambda i, j: (j, 0, 0)),  # bf|ba
                pl.BlockSpec((tf, D), lambda i, j: (j, 0)),                      # Wo^T tile
                pl.BlockSpec((1, D), lambda i, j: (0, 0)),                       # bo
            ],
            out_specs=pl.BlockSpec((tm, D), lambda i, j: (i, 0)),  # resident over j
            scratch_shapes=[pltpu.VMEM((tm, D), jnp.float32)],
        ),
        compiler_params=pltpu.CompilerParams(
            dimension_semantics=("parallel", "arbitrary"),
            vmem_limit_bytes=int(min(cap * 0.85, 110 * 1024 * 1024)),
        ),
        cost_estimate=cost,
    )(x2, w_gate, b_gate, wo_t, bo)

    return out[:M].reshape(orig_shape)


# ---------------------------------------------------------------- reference --
def ffn_swiglu_ref(x, wf, bf, wa, ba, wo, bo):
    h = x @ wf.T + bf
    a = x @ wa.T + ba
    return (h * (a * jax.nn.sigmoid(a))) @ wo.T + bo


# --------------------------------------------------------------------- main --
if __name__ == "__main__":
    B, T = 2, 25          # batch, seq  (M = 50, not a tile multiple -> pads)
    D, Fh = 64, 200       # dim, dim_ff_hidden (not a tile multiple -> pads)

    key = jax.random.PRNGKey(0)
    kx, k1, k2, k3, k4, k5, k6 = jax.random.split(key, 7)

    x = jax.random.normal(kx, (B, T, D), jnp.float32)
    wf = jax.random.normal(k1, (Fh, D), jnp.float32) * 0.05
    bf = jax.random.normal(k2, (Fh,), jnp.float32) * 0.05
    wa = jax.random.normal(k3, (Fh, D), jnp.float32) * 0.05
    ba = jax.random.normal(k4, (Fh,), jnp.float32) * 0.05
    wo = jax.random.normal(k5, (D, Fh), jnp.float32) * 0.05
    bo = jax.random.normal(k6, (D,), jnp.float32) * 0.05

    y_ref = ffn_swiglu_ref(x, wf, bf, wa, ba, wo, bo)

    # 1) One-time weight repack (auto hidden tile), auto row tile.
    params = pack_ffn_swiglu_params(wf, bf, wa, ba, wo, bo)
    fwd = jax.jit(ffn_swiglu)
    y = fwd(x, params)
    jax.block_until_ready(y)
    assert y.shape == x.shape, y.shape
    assert bool(jnp.all(jnp.isfinite(y)))
    err1 = float(jnp.max(jnp.abs(y - y_ref)))
    assert err1 < 2e-2, f"auto-tile max abs error {err1}"

    # 2) Small explicit tiles: exercises the multi-tile hidden reduction
    #    (accumulate / finalize) and the M / F zero-padding paths.
    params_small = pack_ffn_swiglu_params(wf, bf, wa, ba, wo, bo, block_f=64)
    fwd_small = jax.jit(functools.partial(ffn_swiglu, block_m=16))
    y2 = fwd_small(x, params_small)
    jax.block_until_ready(y2)
    assert y2.shape == x.shape, y2.shape
    err2 = float(jnp.max(jnp.abs(y2 - y_ref)))
    assert err2 < 2e-2, f"multi-tile max abs error {err2}"

    print("KERNEL_OK")
</pallas_src>

<mosaic_0001>
module attributes {stable_mosaic.version = 11 : i64} {
  func.func @ffn_swiglu_kernel(%arg0: i32, %arg1: i32, %arg2: memref<56x64xf32, #tpu.memory_space<vmem>>, %arg3: memref<1x64x512xbf16, #tpu.memory_space<vmem>>, %arg4: memref<1x1x512xf32, #tpu.memory_space<vmem>>, %arg5: memref<256x64xbf16, #tpu.memory_space<vmem>>, %arg6: memref<1x64xf32, #tpu.memory_space<vmem>>, %arg7: memref<56x64xf32, #tpu.memory_space<vmem>>, %arg8: memref<56x64xf32, #tpu.memory_space<vmem>>) attributes {dimension_semantics = [#tpu.dimension_semantics<parallel>, #tpu.dimension_semantics<arbitrary>], iteration_bounds = array<i64: 1, 1>, scalar_prefetch = 0 : i64, scratch_operands = 1 : i64, tpu.core_type = #tpu.core_type<tc>, window_params = [{transform_indices = @transform_0, window_bounds = array<i64: 56, 64>}, {transform_indices = @transform_1, window_bounds = array<i64: 1, 64, 512>}, {transform_indices = @transform_2, window_bounds = array<i64: 1, 1, 512>}, {transform_indices = @transform_3, window_bounds = array<i64: 256, 64>}, {pipeline_mode = #tpu.pipeline_mode<synchronous>, transform_indices = @transform_4, window_bounds = array<i64: 1, 64>}, {transform_indices = @transform_5, window_bounds = array<i64: 56, 64>}]} {
    %c0_i32 = arith.constant 0 : i32
    %0 = arith.cmpi eq, %arg1, %c0_i32 : i32
    %1 = arith.extui %0 : i1 to i32
    %c0_i32_0 = arith.constant 0 : i32
    %2 = arith.cmpi ne, %1, %c0_i32_0 : i32
    scf.if %2 {
      %cst_18 = arith.constant 0.000000e+00 : f32
      %30 = vector.broadcast %cst_18 : f32 to vector<56x64xf32>
      %c0_19 = arith.constant 0 : index
      %c0_20 = arith.constant 0 : index
      %31 = vector.load %arg8[%c0_19, %c0_20] : memref<56x64xf32, #tpu.memory_space<vmem>>, vector<56x64xf32>
      tpu.vector_store %arg8[%c0_19, %c0_20], %30 {strides = array<i32>} : memref<56x64xf32, #tpu.memory_space<vmem>>, vector<56x64xf32>,
    } else {
    }
    %c0 = arith.constant 0 : index
    %c0_1 = arith.constant 0 : index
    %3 = vector.load %arg2[%c0, %c0_1] : memref<56x64xf32, #tpu.memory_space<vmem>>, vector<56x64xf32>
    %4 = arith.truncf %3 : vector<56x64xf32> to vector<56x64xbf16>
    %c0_2 = arith.constant 0 : index
    %c0_3 = arith.constant 0 : index
    %c0_4 = arith.constant 0 : index
    %5 = vector.load %arg3[%c0_2, %c0_3, %c0_4] : memref<1x64x512xbf16, #tpu.memory_space<vmem>>, vector<1x64x512xbf16>
    %6 = vector.shape_cast %5 : vector<1x64x512xbf16> to vector<64x512xbf16>
    %cst = arith.constant dense<0.000000e+00> : vector<56x512xf32>
    %7 = tpu.matmul %4, %6, %cst {dimension_numbers = #tpu.dot_dimension_numbers<[1], [0], [0], [1], [0, 0, 1, 1], [], []>} : vector<56x64xbf16>, vector<64x512xbf16>, vector<56x512xf32> -> vector<56x512xf32>
    %c0_5 = arith.constant 0 : index
    %c0_6 = arith.constant 0 : index
    %c0_7 = arith.constant 0 : index
    %8 = vector.load %arg4[%c0_5, %c0_6, %c0_7] : memref<1x1x512xf32, #tpu.memory_space<vmem>>, vector<1x1x512xf32>
    %9 = vector.shape_cast %8 : vector<1x1x512xf32> to vector<1x512xf32>
    %10 = vector.broadcast %9 : vector<1x512xf32> to vector<56x512xf32>
    %11 = arith.addf %7, %10 : vector<56x512xf32>
    %12 = vector.extract_strided_slice %11 {offsets = [0, 0], sizes = [56, 256], strides = [1, 1]} : vector<56x512xf32> to vector<56x256xf32>
    %13 = vector.extract_strided_slice %11 {offsets = [0, 256], sizes = [56, 256], strides = [1, 1]} : vector<56x512xf32> to vector<56x256xf32>
    %14 = arith.negf %13 : vector<56x256xf32>
    %15 = math.exp %14 : vector<56x256xf32>
    %cst_8 = arith.constant 1.000000e+00 : f32
    %16 = vector.broadcast %cst_8 : f32 to vector<56x256xf32>
    %17 = arith.addf %16, %15 : vector<56x256xf32>
    %18 = arith.divf %16, %17 : vector<56x256xf32>
    %19 = arith.mulf %13, %18 : vector<56x256xf32>
    %20 = arith.mulf %12, %19 : vector<56x256xf32>
    %c0_9 = arith.constant 0 : index
    %c0_10 = arith.constant 0 : index
    %21 = vector.load %arg8[%c0_9, %c0_10] : memref<56x64xf32, #tpu.memory_space<vmem>>, vector<56x64xf32>
    %22 = arith.truncf %20 : vector<56x256xf32> to vector<56x256xbf16>
    %c0_11 = arith.constant 0 : index
    %c0_12 = arith.constant 0 : index
    %23 = vector.load %arg5[%c0_11, %c0_12] : memref<256x64xbf16, #tpu.memory_space<vmem>>, vector<256x64xbf16>
    %cst_13 = arith.constant dense<0.000000e+00> : vector<56x64xf32>
    %24 = tpu.matmul %22, %23, %cst_13 {dimension_numbers = #tpu.dot_dimension_numbers<[1], [0], [0], [1], [0, 0, 1, 1], [], []>} : vector<56x256xbf16>, vector<256x64xbf16>, vector<56x64xf32> -> vector<56x64xf32>
    %25 = arith.addf %21, %24 : vector<56x64xf32>
    %c0_14 = arith.constant 0 : index
    %c0_15 = arith.constant 0 : index
    %26 = vector.load %arg8[%c0_14, %c0_15] : memref<56x64xf32, #tpu.memory_space<vmem>>, vector<56x64xf32>
    tpu.vector_store %arg8[%c0_14, %c0_15], %25 {strides = array<i32>} : memref<56x64xf32, #tpu.memory_space<vmem>>, vector<56x64xf32>,
    %c0_i32_16 = arith.constant 0 : i32
    %27 = arith.cmpi eq, %arg1, %c0_i32_16 : i32
    %28 = arith.extui %27 : i1 to i32
    %c0_i32_17 = arith.constant 0 : i32
    %29 = arith.cmpi ne, %28, %c0_i32_17 : i32
    scf.if %29 {
      %c0_18 = arith.constant 0 : index
      %c0_19 = arith.constant 0 : index
      %30 = vector.load %arg8[%c0_18, %c0_19] : memref<56x64xf32, #tpu.memory_space<vmem>>, vector<56x64xf32>
      %c0_20 = arith.constant 0 : index
      %c0_21 = arith.constant 0 : index
      %31 = vector.load %arg6[%c0_20, %c0_21] : memref<1x64xf32, #tpu.memory_space<vmem>>, vector<1x64xf32>
      %32 = vector.broadcast %31 : vector<1x64xf32> to vector<56x64xf32>
      %33 = arith.addf %30, %32 : vector<56x64xf32>
      %c0_22 = arith.constant 0 : index
      %c0_23 = arith.constant 0 : index
      %34 = vector.load %arg7[%c0_22, %c0_23] : memref<56x64xf32, #tpu.memory_space<vmem>>, vector<56x64xf32>
      tpu.vector_store %arg7[%c0_22, %c0_23], %33 {strides = array<i32>} : memref<56x64xf32, #tpu.memory_space<vmem>>, vector<56x64xf32>,
    } else {
    }
    return
  }
  func.func @transform_0(%arg0: i32, %arg1: i32) -> (i32, i32) {
    %c0_i32 = arith.constant 0 : i32
    %c0_i32_0 = arith.constant 0 : i32
    return %arg0, %c0_i32 : i32, i32
  }
  func.func @transform_1(%arg0: i32, %arg1: i32) -> (i32, i32, i32) {
    %c0_i32 = arith.constant 0 : i32
    %c0_i32_0 = arith.constant 0 : i32
    %c0_i32_1 = arith.constant 0 : i32
    return %arg1, %c0_i32, %c0_i32_0 : i32, i32, i32
  }
  func.func @transform_2(%arg0: i32, %arg1: i32) -> (i32, i32, i32) {
    %c0_i32 = arith.constant 0 : i32
    %c0_i32_0 = arith.constant 0 : i32
    %c0_i32_1 = arith.constant 0 : i32
    return %arg1, %c0_i32, %c0_i32_0 : i32, i32, i32
  }
  func.func @transform_3(%arg0: i32, %arg1: i32) -> (i32, i32) {
    %c0_i32 = arith.constant 0 : i32
    %c0_i32_0 = arith.constant 0 : i32
    return %arg1, %c0_i32 : i32, i32
  }
  func.func @transform_4(%arg0: i32, %arg1: i32) -> (i32, i32) {
    %c0_i32 = arith.constant 0 : i32
    %c0_i32_0 = arith.constant 0 : i32
    %c0_i32_1 = arith.constant 0 : i32
    return %c0_i32, %c0_i32_0 : i32, i32
  }
  func.func @transform_5(%arg0: i32, %arg1: i32) -> (i32, i32) {
    %c0_i32 = arith.constant 0 : i32
    %c0_i32_0 = arith.constant 0 : i32
    return %arg0, %c0_i32 : i32, i32
  }
}

</mosaic_0001>

<llo_original>
// kernel: ffn_swiglu.1
$region0: #{ffn_swiglu.1}
  #allocation0 [shape = 'u32[]', space=smem, size = 0x4, offset = 0x4, fixed_abs, tag = 'smem constant byte address 0x4 - core index']
  #allocation1 [shape = 'u32[144,128]{1,0:T(1,128)}', space=vmem, size = 0x12000, scoped, tag = 'internal scratch']
  #allocation2 [shape = 'f32[56,64]{1,0:T(8,128)}', space=vmem, size = 0x7000, scoped, tag = 'scratch operand']
  %s0 = inlined_call_operand.vmem [shape: f32[56,64], index: 0, kind: input, shape index: {}]
  %s1 = inlined_call_operand.vmem [shape: bf16[1,64,512], index: 1, kind: input, shape index: {}]
  %s2 = inlined_call_operand.vmem [shape: f32[1,1,512], index: 2, kind: input, shape index: {}]
  %s3 = inlined_call_operand.vmem [shape: bf16[256,64], index: 3, kind: input, shape index: {}]
  %s4 = inlined_call_operand.vmem [shape: f32[1,64], index: 4, kind: input, shape index: {}]
  %s5 = inlined_call_operand.vmem [shape: f32[56,64], index: 5, kind: output, shape index: {}]
  %s6 = sld [smem:[#allocation0]]
  $region38: #{ffn_swiglu.1} parent=0
    _
  %s8 = ssub.s32 1, %s6
  %s9 = scalar_select 0, %s8, %s6
  // Predicated region
  $region2: #{ffn_swiglu.1} parent=0 // pred_check
    _
  $region3: #{ffn_swiglu.1} parent=0 // pred_check_branch
    %11 = sbr.rel (0) target = $region5
  $region4: #{ffn_swiglu.1} parent=0 // pred_region
    _
  $region5: #{ffn_swiglu.1} parent=0 // pred_fallthru
    _
  // Predicated region
  $region6: #{ffn_swiglu.1} parent=0 // pred_check
    _
  $region7: #{ffn_swiglu.1} parent=0 // pred_check_branch
    %13 = sbr.rel (0) target = $region9
  $region8: #{ffn_swiglu.1} parent=0 // pred_region
    _
  $region9: #{ffn_swiglu.1} parent=0 // pred_fallthru
    _
  // Predicated region
  $region10: #{ffn_swiglu.1} parent=0 // pred_check
    _
  $region11: #{ffn_swiglu.1} parent=0 // pred_check_branch
    %15 = sbr.rel (0) target = $region13
  $region12: #{ffn_swiglu.1} parent=0 // pred_region
    _
  $region13: #{ffn_swiglu.1} parent=0 // pred_fallthru
    _
  // Predicated region
  $region14: #{ffn_swiglu.1} parent=0 // pred_check
    _
  $region15: #{ffn_swiglu.1} parent=0 // pred_check_branch
    %17 = sbr.rel (0) target = $region17
  $region16: #{ffn_swiglu.1} parent=0 // pred_region
    _
  $region17: #{ffn_swiglu.1} parent=0 // pred_fallthru
    _
  // Predicated region
  $region18: #{ffn_swiglu.1} parent=0 // pred_check
    _
  $region19: #{ffn_swiglu.1} parent=0 // pred_check_branch
    %19 = sbr.rel (0) target = $region21
  $region20: #{ffn_swiglu.1} parent=0 // pred_region
    _
  $region21: #{ffn_swiglu.1} parent=0 // pred_fallthru
    _
  %p21 = scmp.eq.s32.totalorder 0, 0
  // Predicated region
  $region22: #{ffn_swiglu.1} parent=0 // pred_check
    %p22 = pneg %p21
  $region23: #{ffn_swiglu.1} parent=0 // pred_check_branch
    %24 = sbr.rel (%p22) target = $region25
  $region24: #{ffn_swiglu.1} parent=0 // pred_region
    %vm25 = vcmask 523264
    %26 = vst.msk [vmem:[#allocation2] sm:$0xff] %vm25, 0.0
    %27 = vst.msk [vmem:[#allocation2 + $0x8] sm:$0xff] %vm25, 0.0
    %28 = vst.msk [vmem:[#allocation2 + $0x10] sm:$0xff] %vm25, 0.0
    %29 = vst.msk [vmem:[#allocation2 + $0x18] sm:$0xff] %vm25, 0.0
    %30 = vst.msk [vmem:[#allocation2 + $0x20] sm:$0xff] %vm25, 0.0
    %31 = vst.msk [vmem:[#allocation2 + $0x28] sm:$0xff] %vm25, 0.0
    %32 = vst.msk [vmem:[#allocation2 + $0x30] sm:$0xff] %vm25, 0.0
  $region25: #{ffn_swiglu.1} parent=0 // pred_fallthru
    _
  %v33 = vld [vmem:[%s0] sm:$0xff]
  %v34 = vld [vmem:[%s0 + $0x8] sm:$0xff]
  %v35 = vld [vmem:[%s0 + $0x10] sm:$0xff]
  %v36 = vld [vmem:[%s0 + $0x18] sm:$0xff]
  %v37 = vld [vmem:[%s0 + $0x20] sm:$0xff]
  %v38 = vld [vmem:[%s0 + $0x28] sm:$0xff]
  %v39 = vld [vmem:[%s0 + $0x30] sm:$0xff]
  %v40 = vpack.c.bf16 %v34, %v33
  %v41 = vpack.c.bf16 %v36, %v35
  %v42 = vpack.c.bf16 %v38, %v37
  %v43 = vpack.c.bf16 %v39, %v39
  %v44 = vld [vmem:[%s1] sm:$0xff]
  %v45 = vld [vmem:[%s1 + $0x8] sm:$0xff]
  %v46 = vld [vmem:[%s1 + $0x10] sm:$0xff]
  %v47 = vld [vmem:[%s1 + $0x18] sm:$0xff]
  %v48 = vld [vmem:[%s1 + $0x20] sm:$0xff]
  %v49 = vld [vmem:[%s1 + $0x28] sm:$0xff]
  %v50 = vld [vmem:[%s1 + $0x30] sm:$0xff]
  %v51 = vld [vmem:[%s1 + $0x38] sm:$0xff]
  %v52 = vld [vmem:[%s1 + $0x40] sm:$0xff]
  %v53 = vld [vmem:[%s1 + $0x48] sm:$0xff]
  %v54 = vld [vmem:[%s1 + $0x50] sm:$0xff]
  %v55 = vld [vmem:[%s1 + $0x58] sm:$0xff]
  %v56 = vld [vmem:[%s1 + $0x60] sm:$0xff]
  %v57 = vld [vmem:[%s1 + $0x68] sm:$0xff]
  %v58 = vld [vmem:[%s1 + $0x70] sm:$0xff]
  %v59 = vld [vmem:[%s1 + $0x78] sm:$0xff]
  %v60 = vld [vmem:[%s2] sm:$0xf]
  %v62 = vlaneseq
  %v63 = vshrl.u32 %v62, 7
  %v64 = vsub.s32 0, %v63
  %v65 = vrot.slane %v60, %v64
  %v66 = vlaneseq
  %v67 = vshrl.u32 %v66, 7
  %v68 = vsub.s32 1, %v67
  %v69 = vrot.slane %v60, %v68
  %v70 = vlaneseq
  %v71 = vshrl.u32 %v70, 7
  %v72 = vsub.s32 2, %v71
  %v73 = vrot.slane %v60, %v72
  %v74 = vlaneseq
  %v75 = vshrl.u32 %v74, 7
  %v76 = vsub.s32 3, %v75
  %v77 = vrot.slane %v60, %v76
  %v98 = vunpack.c.l.b16 %v44
  %v99 = vunpack.c.h.b16 %v44
  %v100 = vunpack.c.l.b16 %v45
  %v101 = vunpack.c.h.b16 %v45
  %v102 = vunpack.c.l.b16 %v46
  %v103 = vunpack.c.h.b16 %v46
  %v104 = vunpack.c.l.b16 %v47
  %v105 = vunpack.c.h.b16 %v47
  %v106 = vunpack.c.l.b16 %v48
  %v107 = vunpack.c.h.b16 %v48
  %v108 = vunpack.c.l.b16 %v49
  %v109 = vunpack.c.h.b16 %v49
  %v110 = vunpack.c.l.b16 %v50
  %v111 = vunpack.c.h.b16 %v50
  %v112 = vunpack.c.l.b16 %v51
  %v113 = vunpack.c.h.b16 %v51
  %v114 = vunpack.c.l.b16 %v52
  %v115 = vunpack.c.h.b16 %v52
  %v116 = vunpack.c.l.b16 %v53
  %v117 = vunpack.c.h.b16 %v53
  %v118 = vunpack.c.l.b16 %v54
  %v119 = vunpack.c.h.b16 %v54
  %v120 = vunpack.c.l.b16 %v55
  %v121 = vunpack.c.h.b16 %v55
  %v122 = vunpack.c.l.b16 %v56
  %v123 = vunpack.c.h.b16 %v56
  %v124 = vunpack.c.l.b16 %v57
  %v125 = vunpack.c.h.b16 %v57
  %v126 = vunpack.c.l.b16 %v58
  %v127 = vunpack.c.h.b16 %v58
  %v128 = vunpack.c.l.b16 %v59
  %v129 = vunpack.c.h.b16 %v59
  %v130 = vpack.c.b16 %v102, %v98
  %v131 = vpack.c.b16 %v103, %v99
  %v132 = vpack.c.b16 %v104, %v100
  %v133 = vpack.c.b16 %v105, %v101
  %v134 = vpack.c.b16 %v110, %v106
  %v135 = vpack.c.b16 %v111, %v107
  %v136 = vpack.c.b16 %v112, %v108
  %v137 = vpack.c.b16 %v113, %v109
  %v138 = vpack.c.b16 %v118, %v114
  %v139 = vpack.c.b16 %v119, %v115
  %v140 = vpack.c.b16 %v120, %v116
  %v141 = vpack.c.b16 %v121, %v117
  %v142 = vpack.c.b16 %v126, %v122
  %v143 = vpack.c.b16 %v127, %v123
  %v144 = vpack.c.b16 %v128, %v124
  %v145 = vpack.c.b16 %v129, %v125
  %vm162 = vcmask 523264
  %v164 = vsel %vm162, %v40, 0
  %v167 = vsel %vm162, %v41, 0
  %v170 = vsel %vm162, %v42, 0
  %v173 = vsel %vm162, %v43, 0
  %175 = vmatprep.subr.bf16.mxu0 %v131
  %176 = vmatpush1.bf16.msra.mxu0 %v130
  %177 = vmatprep.subr.bf16.mxu0 %v135
  %178 = vmatpush1.bf16.msra.mxu0 %v134
  %179 = vmatprep.subr.bf16.mxu0 %v139
  %180 = vmatpush1.bf16.msra.mxu0 %v138
  %181 = vmatprep.subr.bf16.mxu0 %v143
  %182 = vmatpush1.bf16.msra.mxu0 %v142
  %183 = vmatprep.subr.bf16.mxu0 0
  %184 = vmatpush1.bf16.msra.mxu0 0
  %185 = vmatprep.subr.bf16.mxu0 0
  %186 = vmatpush1.bf16.msra.mxu0 0
  %187 = vmatprep.subr.bf16.mxu0 0
  %188 = vmatpush1.bf16.msra.mxu0 0
  %189 = vmatprep.subr.bf16.mxu0 0
  %190 = vmatpush1.bf16.msra.mxu0 0
  %191 = vmatprep.subr.bf16.mxu0 0
  %192 = vmatpush1.bf16.msra.mxu0 0
  %193 = vmatprep.subr.bf16.mxu0 0
  %194 = vmatpush1.bf16.msra.mxu0 0
  %195 = vmatprep.subr.bf16.mxu0 0
  %196 = vmatpush1.bf16.msra.mxu0 0
  %197 = vmatprep.subr.bf16.mxu0 0
  %198 = vmatpush1.bf16.msra.mxu0 0
  %199 = vmatprep.subr.bf16.mxu0 0
  %200 = vmatpush1.bf16.msra.mxu0 0
  %201 = vmatprep.subr.bf16.mxu0 0
  %202 = vmatpush1.bf16.msra.mxu0 0
  %203 = vmatprep.subr.bf16.mxu0 0
  %204 = vmatpush1.bf16.msra.mxu0 0
  %205 = vmatprep.subr.bf16.mxu0 0
  %206 = vmatpush1.bf16.msra.mxu0 0
  %207 = vmatprep.mubr.bf16.mxu0 0
  %208 = vmatmul.mubr.bf16.gmra.mrb[0].mxu0 %v164
  %v209 = vpop.f32.mrb[0].mxu0
  %v210 = vadd.f32 %v65, %v209
  %v211 = vpop.f32.mrb[0].mxu0
  %v212 = vadd.f32 %v69, %v211
  %v213 = vpop.f32.mrb[0].mxu0
  %v214 = vadd.f32 %v65, %v213
  %v215 = vpop.f32.mrb[0].mxu0
  %v216 = vadd.f32 %v69, %v215
  %217 = vmatprep.mubr.bf16.mxu0 0
  %218 = vmatmul.mubr.bf16.gmra.mrb[0].mxu0 %v167
  %v219 = vpop.f32.mrb[0].mxu0
  %v220 = vadd.f32 %v65, %v219
  %v221 = vpop.f32.mrb[0].mxu0
  %v222 = vadd.f32 %v69, %v221
  %v223 = vpop.f32.mrb[0].mxu0
  %v224 = vadd.f32 %v65, %v223
  %v225 = vpop.f32.mrb[0].mxu0
  %v226 = vadd.f32 %v69, %v225
  %227 = vmatprep.mubr.bf16.mxu0 0
  %228 = vmatmul.mubr.bf16.gmra.mrb[0].mxu0 %v170
  %v229 = vpop.f32.mrb[0].mxu0
  %v230 = vadd.f32 %v65, %v229
  %v231 = vpop.f32.mrb[0].mxu0
  %v232 = vadd.f32 %v69, %v231
  %v233 = vpop.f32.mrb[0].mxu0
  %v234 = vadd.f32 %v65, %v233
  %v235 = vpop.f32.mrb[0].mxu0
  %v236 = vadd.f32 %v69, %v235
  %237 = vmatprep.mubr.bf16.mxu0 0
  %238 = vmatmul.mubr.bf16.gmra.mrb[0].mxu0 %v173
  %v239 = vpop.f32.mrb[0].mxu0
  %v240 = vadd.f32 %v65, %v239
  %v241 = vpop.f32.mrb[0].mxu0
  %v242 = vadd.f32 %v69, %v241
  %v243 = vpop.f32.mrb[0].mxu0
  %v244 = vpop.f32.mrb[0].mxu0
  %245 = vdwg.mxu0
  %246 = vmatprep.subr.bf16.mxu0 %v133
  %247 = vmatpush1.bf16.msra.mxu0 %v132
  %248 = vmatprep.subr.bf16.mxu0 %v137
  %249 = vmatpush1.bf16.msra.mxu0 %v136
  %250 = vmatprep.subr.bf16.mxu0 %v141
  %251 = vmatpush1.bf16.msra.mxu0 %v140
  %252 = vmatprep.subr.bf16.mxu0 %v145
  %253 = vmatpush1.bf16.msra.mxu0 %v144
  %254 = vmatprep.subr.bf16.mxu0 0
  %255 = vmatpush1.bf16.msra.mxu0 0
  %256 = vmatprep.subr.bf16.mxu0 0
  %257 = vmatpush1.bf16.msra.mxu0 0
  %258 = vmatprep.subr.bf16.mxu0 0
  %259 = vmatpush1.bf16.msra.mxu0 0
  %260 = vmatprep.subr.bf16.mxu0 0
  %261 = vmatpush1.bf16.msra.mxu0 0
  %262 = vmatprep.subr.bf16.mxu0 0
  %263 = vmatpush1.bf16.msra.mxu0 0
  %264 = vmatprep.subr.bf16.mxu0 0
  %265 = vmatpush1.bf16.msra.mxu0 0
  %266 = vmatprep.subr.bf16.mxu0 0
  %267 = vmatpush1.bf16.msra.mxu0 0
  %268 = vmatprep.subr.bf16.mxu0 0
  %269 = vmatpush1.bf16.msra.mxu0 0
  %270 = vmatprep.subr.bf16.mxu0 0
  %271 = vmatpush1.bf16.msra.mxu0 0
  %272 = vmatprep.subr.bf16.mxu0 0
  %273 = vmatpush1.bf16.msra.mxu0 0
  %274 = vmatprep.subr.bf16.mxu0 0
  %275 = vmatpush1.bf16.msra.mxu0 0
  %276 = vmatprep.subr.bf16.mxu0 0
  %277 = vmatpush1.bf16.msra.mxu0 0
  %278 = vmatprep.mubr.bf16.mxu0 0
  %279 = vmatmul.mubr.bf16.gmra.mrb[0].mxu0 %v164
  %v280 = vpop.f32.mrb[0].mxu0
  %v281 = vadd.f32 %v73, %v280
  %v282 = vpop.f32.mrb[0].mxu0
  %v283 = vadd.f32 %v77, %v282
  %v284 = vpop.f32.mrb[0].mxu0
  %v285 = vadd.f32 %v73, %v284
  %v286 = vpop.f32.mrb[0].mxu0
  %v287 = vadd.f32 %v77, %v286
  %288 = vmatprep.mubr.bf16.mxu0 0
  %289 = vmatmul.mubr.bf16.gmra.mrb[0].mxu0 %v167
  %v290 = vpop.f32.mrb[0].mxu0
  %v291 = vadd.f32 %v73, %v290
  %v292 = vpop.f32.mrb[0].mxu0
  %v293 = vadd.f32 %v77, %v292
  %v294 = vpop.f32.mrb[0].mxu0
  %v295 = vadd.f32 %v73, %v294
  %v296 = vpop.f32.mrb[0].mxu0
  %v297 = vadd.f32 %v77, %v296
  %298 = vmatprep.mubr.bf16.mxu0 0
  %299 = vmatmul.mubr.bf16.gmra.mrb[0].mxu0 %v170
  %v300 = vpop.f32.mrb[0].mxu0
  %v301 = vadd.f32 %v73, %v300
  %v302 = vpop.f32.mrb[0].mxu0
  %v303 = vadd.f32 %v77, %v302
  %v304 = vpop.f32.mrb[0].mxu0
  %v305 = vadd.f32 %v73, %v304
  %v306 = vpop.f32.mrb[0].mxu0
  %v307 = vadd.f32 %v77, %v306
  %308 = vmatprep.mubr.bf16.mxu0 0
  %309 = vmatmul.mubr.bf16.gmra.mrb[0].mxu0 %v173
  %v310 = vpop.f32.mrb[0].mxu0
  %v311 = vadd.f32 %v73, %v310
  %v312 = vpop.f32.mrb[0].mxu0
  %v313 = vadd.f32 %v77, %v312
  %v314 = vpop.f32.mrb[0].mxu0
  %v315 = vpop.f32.mrb[0].mxu0
  %316 = vdwg.mxu0
  %v317 = vxor.u32 %v281, 2147483648
  %v318 = vxor.u32 %v283, 2147483648
  %v319 = vxor.u32 %v285, 2147483648
  %v320 = vxor.u32 %v287, 2147483648
  %v321 = vxor.u32 %v291, 2147483648
  %v322 = vxor.u32 %v293, 2147483648
  %v323 = vxor.u32 %v295, 2147483648
  %v324 = vxor.u32 %v297, 2147483648
  %v325 = vxor.u32 %v301, 2147483648
  %v326 = vxor.u32 %v303, 2147483648
  %v327 = vxor.u32 %v305, 2147483648
  %v328 = vxor.u32 %v307, 2147483648
  %v329 = vxor.u32 %v311, 2147483648
  %v330 = vxor.u32 %v313, 2147483648
  %v331 = vmul.f32 %v317, 1.442695
  %v332 = vpow.pop %v331
  %v333 = vmul.f32 %v318, 1.442695
  %v334 = vpow.pop %v333
  %v335 = vmul.f32 %v319, 1.442695
  %v336 = vpow.pop %v335
  %v337 = vmul.f32 %v320, 1.442695
  %v338 = vpow.pop %v337
  %v339 = vmul.f32 %v321, 1.442695
  %v340 = vpow.pop %v339
  %v341 = vmul.f32 %v322, 1.442695
  %v342 = vpow.pop %v341
  %v343 = vmul.f32 %v323, 1.442695
  %v344 = vpow.pop %v343
  %v345 = vmul.f32 %v324, 1.442695
  %v346 = vpow.pop %v345
  %v347 = vmul.f32 %v325, 1.442695
  %v348 = vpow.pop %v347
  %v349 = vmul.f32 %v326, 1.442695
  %v350 = vpow.pop %v349
  %v351 = vmul.f32 %v327, 1.442695
  %v352 = vpow.pop %v351
  %v353 = vmul.f32 %v328, 1.442695
  %v354 = vpow.pop %v353
  %v355 = vmul.f32 %v329, 1.442695
  %v356 = vpow.pop %v355
  %v357 = vmul.f32 %v330, 1.442695
  %v358 = vpow.pop %v357
  %v359 = vadd.f32 %v332, 1.0
  %v360 = vadd.f32 %v334, 1.0
  %v361 = vadd.f32 %v336, 1.0
  %v362 = vadd.f32 %v338, 1.0
  %v363 = vadd.f32 %v340, 1.0
  %v364 = vadd.f32 %v342, 1.0
  %v365 = vadd.f32 %v344, 1.0
  %v366 = vadd.f32 %v346, 1.0
  %v367 = vadd.f32 %v348, 1.0
  %v368 = vadd.f32 %v350, 1.0
  %v369 = vadd.f32 %v352, 1.0
  %v370 = vadd.f32 %v354, 1.0
  %v371 = vadd.f32 %v356, 1.0
  %v372 = vadd.f32 %v358, 1.0
  %v373 = vrcp.pop %v359
  %v374 = vmul.f32 1.0, %v373
  %v375 = vrcp.pop %v360
  %v376 = vmul.f32 1.0, %v375
  %v377 = vrcp.pop %v361
  %v378 = vmul.f32 1.0, %v377
  %v379 = vrcp.pop %v362
  %v380 = vmul.f32 1.0, %v379
  %v381 = vrcp.pop %v363
  %v382 = vmul.f32 1.0, %v381
  %v383 = vrcp.pop %v364
  %v384 = vmul.f32 1.0, %v383
  %v385 = vrcp.pop %v365
  %v386 = vmul.f32 1.0, %v385
  %v387 = vrcp.pop %v366
  %v388 = vmul.f32 1.0, %v387
  %v389 = vrcp.pop %v367
  %v390 = vmul.f32 1.0, %v389
  %v391 = vrcp.pop %v368
  %v392 = vmul.f32 1.0, %v391
  %v393 = vrcp.pop %v369
  %v394 = vmul.f32 1.0, %v393
  %v395 = vrcp.pop %v370
  %v396 = vmul.f32 1.0, %v395
  %v397 = vrcp.pop %v371
  %v398 = vmul.f32 1.0, %v397
  %v399 = vrcp.pop %v372
  %v400 = vmul.f32 1.0, %v399
  %v401 = vmul.f32 %v281, %v374
  %v402 = vmul.f32 %v283, %v376
  %v403 = vmul.f32 %v285, %v378
  %v404 = vmul.f32 %v287, %v380
  %v405 = vmul.f32 %v291, %v382
  %v406 = vmul.f32 %v293, %v384
  %v407 = vmul.f32 %v295, %v386
  %v408 = vmul.f32 %v297, %v388
  %v409 = vmul.f32 %v301, %v390
  %v410 = vmul.f32 %v303, %v392
  %v411 = vmul.f32 %v305, %v394
  %v412 = vmul.f32 %v307, %v396
  %v413 = vmul.f32 %v311, %v398
  %v414 = vmul.f32 %v313, %v400
  %v415 = vmul.f32 %v210, %v401
  %v416 = vmul.f32 %v212, %v402
  %v417 = vmul.f32 %v214, %v403
  %v418 = vmul.f32 %v216, %v404
  %v419 = vmul.f32 %v220, %v405
  %v420 = vmul.f32 %v222, %v406
  %v421 = vmul.f32 %v224, %v407
  %v422 = vmul.f32 %v226, %v408
  %v423 = vmul.f32 %v230, %v409
  %v424 = vmul.f32 %v232, %v410
  %v425 = vmul.f32 %v234, %v411
  %v426 = vmul.f32 %v236, %v412
  %v427 = vmul.f32 %v240, %v413
  %v428 = vmul.f32 %v242, %v414
  %v429 = vld [vmem:[#allocation2] sm:$0xff]
  %v430 = vld [vmem:[#allocation2 + $0x8] sm:$0xff]
  %v431 = vld [vmem:[#allocation2 + $0x10] sm:$0xff]
  %v432 = vld [vmem:[#allocation2 + $0x18] sm:$0xff]
  %v433 = vld [vmem:[#allocation2 + $0x20] sm:$0xff]
  %v434 = vld [vmem:[#allocation2 + $0x28] sm:$0xff]
  %v435 = vld [vmem:[#allocation2 + $0x30] sm:$0xff]
  %v436 = vpack.c.bf16 %v417, %v415
  %v437 = vpack.c.bf16 %v418, %v416
  %v438 = vpack.c.bf16 %v421, %v419
  %v439 = vpack.c.bf16 %v422, %v420
  %v440 = vpack.c.bf16 %v425, %v423
  %v441 = vpack.c.bf16 %v426, %v424
  %v442 = vpack.c.bf16 %v427, %v427
  %v443 = vpack.c.bf16 %v428, %v428
  %v444 = vld [vmem:[%s3] sm:$0xf]
  %v445 = vld [vmem:[%s3 + $0x4] sm:$0xf]
  %v446 = vld [vmem:[%s3 + $0x8] sm:$0xf]
  %v447 = vld [vmem:[%s3 + $0xc] sm:$0xf]
  %v448 = vld [vmem:[%s3 + $0x10] sm:$0xf]
  %v449 = vld [vmem:[%s3 + $0x14] sm:$0xf]
  %v450 = vld [vmem:[%s3 + $0x18] sm:$0xf]
  %v451 = vld [vmem:[%s3 + $0x1c] sm:$0xf]
  %v452 = vld [vmem:[%s3 + $0x20] sm:$0xf]
  %v453 = vld [vmem:[%s3 + $0x24] sm:$0xf]
  %v454 = vld [vmem:[%s3 + $0x28] sm:$0xf]
  %v455 = vld [vmem:[%s3 + $0x2c] sm:$0xf]
  %v456 = vld [vmem:[%s3 + $0x30] sm:$0xf]
  %v457 = vld [vmem:[%s3 + $0x34] sm:$0xf]
  %v458 = vld [vmem:[%s3 + $0x38] sm:$0xf]
  %v459 = vld [vmem:[%s3 + $0x3c] sm:$0xf]
  %v460 = vld [vmem:[%s3 + $0x40] sm:$0xf]
  %v461 = vld [vmem:[%s3 + $0x44] sm:$0xf]
  %v462 = vld [vmem:[%s3 + $0x48] sm:$0xf]
  %v463 = vld [vmem:[%s3 + $0x4c] sm:$0xf]
  %v464 = vld [vmem:[%s3 + $0x50] sm:$0xf]
  %v465 = vld [vmem:[%s3 + $0x54] sm:$0xf]
  %v466 = vld [vmem:[%s3 + $0x58] sm:$0xf]
  %v467 = vld [vmem:[%s3 + $0x5c] sm:$0xf]
  %v468 = vld [vmem:[%s3 + $0x60] sm:$0xf]
  %v469 = vld [vmem:[%s3 + $0x64] sm:$0xf]
  %v470 = vld [vmem:[%s3 + $0x68] sm:$0xf]
  %v471 = vld [vmem:[%s3 + $0x6c] sm:$0xf]
  %v472 = vld [vmem:[%s3 + $0x70] sm:$0xf]
  %v473 = vld [vmem:[%s3 + $0x74] sm:$0xf]
  %v474 = vld [vmem:[%s3 + $0x78] sm:$0xf]
  %v475 = vld [vmem:[%s3 + $0x7c] sm:$0xf]
  %v508 = vunpack.c.l.b16 %v444
  %v509 = vunpack.c.l.b16 %v445
  %v510 = vunpack.c.l.b16 %v446
  %v511 = vunpack.c.l.b16 %v447
  %v512 = vunpack.c.l.b16 %v448
  %v513 = vunpack.c.l.b16 %v449
  %v514 = vunpack.c.l.b16 %v450
  %v515 = vunpack.c.l.b16 %v451
  %v516 = vunpack.c.l.b16 %v452
  %v517 = vunpack.c.l.b16 %v453
  %v518 = vunpack.c.l.b16 %v454
  %v519 = vunpack.c.l.b16 %v455
  %v520 = vunpack.c.l.b16 %v456
  %v521 = vunpack.c.l.b16 %v457
  %v522 = vunpack.c.l.b16 %v458
  %v523 = vunpack.c.l.b16 %v459
  %v524 = vunpack.c.l.b16 %v460
  %v525 = vunpack.c.l.b16 %v461
  %v526 = vunpack.c.l.b16 %v462
  %v527 = vunpack.c.l.b16 %v463
  %v528 = vunpack.c.l.b16 %v464
  %v529 = vunpack.c.l.b16 %v465
  %v530 = vunpack.c.l.b16 %v466
  %v531 = vunpack.c.l.b16 %v467
  %v532 = vunpack.c.l.b16 %v468
  %v533 = vunpack.c.l.b16 %v469
  %v534 = vunpack.c.l.b16 %v470
  %v535 = vunpack.c.l.b16 %v471
  %v536 = vunpack.c.l.b16 %v472
  %v537 = vunpack.c.l.b16 %v473
  %v538 = vunpack.c.l.b16 %v474
  %v539 = vunpack.c.l.b16 %v475
  %v540 = vpack.c.b16 %v509, %v508
  %v541 = vpack.c.b16 %v511, %v510
  %v542 = vpack.c.b16 %v513, %v512
  %v543 = vpack.c.b16 %v515, %v514
  %v544 = vpack.c.b16 %v517, %v516
  %v545 = vpack.c.b16 %v519, %v518
  %v546 = vpack.c.b16 %v521, %v520
  %v547 = vpack.c.b16 %v523, %v522
  %v548 = vpack.c.b16 %v525, %v524
  %v549 = vpack.c.b16 %v527, %v526
  %v550 = vpack.c.b16 %v529, %v528
  %v551 = vpack.c.b16 %v531, %v530
  %v552 = vpack.c.b16 %v533, %v532
  %v553 = vpack.c.b16 %v535, %v534
  %v554 = vpack.c.b16 %v537, %v536
  %v555 = vpack.c.b16 %v539, %v538
  %572 = vmatprep.subr.bf16.mxu0 0
  %573 = vmatpush1.bf16.msra.mxu0 %v540
  %574 = vmatprep.subr.bf16.mxu0 0
  %575 = vmatpush1.bf16.msra.mxu0 %v541
  %576 = vmatprep.subr.bf16.mxu0 0
  %577 = vmatpush1.bf16.msra.mxu0 %v542
  %578 = vmatprep.subr.bf16.mxu0 0
  %579 = vmatpush1.bf16.msra.mxu0 %v543
  %580 = vmatprep.subr.bf16.mxu0 0
  %581 = vmatpush1.bf16.msra.mxu0 %v544
  %582 = vmatprep.subr.bf16.mxu0 0
  %583 = vmatpush1.bf16.msra.mxu0 %v545
  %584 = vmatprep.subr.bf16.mxu0 0
  %585 = vmatpush1.bf16.msra.mxu0 %v546
  %586 = vmatprep.subr.bf16.mxu0 0
  %587 = vmatpush1.bf16.msra.mxu0 %v547
  %588 = vmatprep.subr.bf16.mxu0 0
  %589 = vmatpush1.bf16.msra.mxu0 %v548
  %590 = vmatprep.subr.bf16.mxu0 0
  %591 = vmatpush1.bf16.msra.mxu0 %v549
  %592 = vmatprep.subr.bf16.mxu0 0
  %593 = vmatpush1.bf16.msra.mxu0 %v550
  %594 = vmatprep.subr.bf16.mxu0 0
  %595 = vmatpush1.bf16.msra.mxu0 %v551
  %596 = vmatprep.subr.bf16.mxu0 0
  %597 = vmatpush1.bf16.msra.mxu0 %v552
  %598 = vmatprep.subr.bf16.mxu0 0
  %599 = vmatpush1.bf16.msra.mxu0 %v553
  %600 = vmatprep.subr.bf16.mxu0 0
  %601 = vmatpush1.bf16.msra.mxu0 %v554
  %602 = vmatprep.subr.bf16.mxu0 0
  %603 = vmatpush1.bf16.msra.mxu0 %v555
  %604 = vmatprep.mubr.bf16.mxu0 %v437
  %605 = vmatmul.mubr.bf16.gmra.mrb[0].mxu0 %v436
  %v606 = vpop.f32.mrb[0].mxu0
  %v607 = vadd.f32 0.0, %v606
  %v608 = vpop.f32.mrb[0].mxu0
  %v609 = vpop.f32.mrb[0].mxu0
  %v610 = vadd.f32 0.0, %v609
  %v611 = vpop.f32.mrb[0].mxu0
  %612 = vmatprep.mubr.bf16.mxu0 %v439
  %613 = vmatmul.mubr.bf16.gmra.mrb[0].mxu0 %v438
  %v614 = vpop.f32.mrb[0].mxu0
  %v615 = vadd.f32 0.0, %v614
  %v616 = vpop.f32.mrb[0].mxu0
  %v617 = vpop.f32.mrb[0].mxu0
  %v618 = vadd.f32 0.0, %v617
  %v619 = vpop.f32.mrb[0].mxu0
  %620 = vmatprep.mubr.bf16.mxu0 %v441
  %621 = vmatmul.mubr.bf16.gmra.mrb[0].mxu0 %v440
  %v622 = vpop.f32.mrb[0].mxu0
  %v623 = vadd.f32 0.0, %v622
  %v624 = vpop.f32.mrb[0].mxu0
  %v625 = vpop.f32.mrb[0].mxu0
  %v626 = vadd.f32 0.0, %v625
  %v627 = vpop.f32.mrb[0].mxu0
  %628 = vmatprep.mubr.bf16.mxu0 %v443
  %629 = vmatmul.mubr.bf16.gmra.mrb[0].mxu0 %v442
  %v630 = vpop.f32.mrb[0].mxu0
  %v631 = vadd.f32 0.0, %v630
  %v632 = vpop.f32.mrb[0].mxu0
  %v633 = vpop.f32.mrb[0].mxu0
  %v634 = vpop.f32.mrb[0].mxu0
  %635 = vdwg.mxu0
  %v636 = vadd.f32 %v429, %v607
  %v637 = vadd.f32 %v430, %v610
  %v638 = vadd.f32 %v431, %v615
  %v639 = vadd.f32 %v432, %v618
  %v640 = vadd.f32 %v433, %v623
  %v641 = vadd.f32 %v434, %v626
  %v642 = vadd.f32 %v435, %v631
  %643 = vst.msk [vmem:[#allocation2] sm:$0xff] %vm162, %v636
  %644 = vst.msk [vmem:[#allocation2 + $0x8] sm:$0xff] %vm162, %v637
  %645 = vst.msk [vmem:[#allocation2 + $0x10] sm:$0xff] %vm162, %v638
  %646 = vst.msk [vmem:[#allocation2 + $0x18] sm:$0xff] %vm162, %v639
  %647 = vst.msk [vmem:[#allocation2 + $0x20] sm:$0xff] %vm162, %v640
  %648 = vst.msk [vmem:[#allocation2 + $0x28] sm:$0xff] %vm162, %v641
  %649 = vst.msk [vmem:[#allocation2 + $0x30] sm:$0xff] %vm162, %v642
  // Predicated region
  $region26: #{ffn_swiglu.1} parent=0 // pred_check
    %p650 = pneg %p21
  $region27: #{ffn_swiglu.1} parent=0 // pred_check_branch
    %652 = sbr.rel (%p650) target = $region29
  $region28: #{ffn_swiglu.1} parent=0 // pred_region
    %v653 = vld [vmem:[#allocation2] sm:$0xff]
    %v654 = vld [vmem:[#allocation2 + $0x8] sm:$0xff]
    %v655 = vld [vmem:[#allocation2 + $0x10] sm:$0xff]
    %v656 = vld [vmem:[#allocation2 + $0x18] sm:$0xff]
    %v657 = vld [vmem:[#allocation2 + $0x20] sm:$0xff]
    %v658 = vld [vmem:[#allocation2 + $0x28] sm:$0xff]
    %v659 = vld [vmem:[#allocation2 + $0x30] sm:$0xff]
    %v660 = vld [vmem:[%s4] sm:$0x1]
    %v662 = vlaneseq
    %v663 = vshrl.u32 %v662, 7
    %v664 = vsub.s32 0, %v663
    %v665 = vrot.slane %v660, %v664
    %v667 = vadd.f32 %v653, %v665
    %v668 = vadd.f32 %v654, %v665
    %v669 = vadd.f32 %v655, %v665
    %v670 = vadd.f32 %v656, %v665
    %v671 = vadd.f32 %v657, %v665
    %v672 = vadd.f32 %v658, %v665
    %v673 = vadd.f32 %v659, %v665
    %674 = vst.msk [vmem:[%s5] sm:$0xff] %vm162, %v667
    %675 = vst.msk [vmem:[%s5 + $0x8] sm:$0xff] %vm162, %v668
    %676 = vst.msk [vmem:[%s5 + $0x10] sm:$0xff] %vm162, %v669
    %677 = vst.msk [vmem:[%s5 + $0x18] sm:$0xff] %vm162, %v670
    %678 = vst.msk [vmem:[%s5 + $0x20] sm:$0xff] %vm162, %v671
    %679 = vst.msk [vmem:[%s5 + $0x28] sm:$0xff] %vm162, %v672
    %680 = vst.msk [vmem:[%s5 + $0x30] sm:$0xff] %vm162, %v673
  $region29: #{ffn_swiglu.1} parent=0 // pred_fallthru
    _
  // Predicated region
  $region30: #{ffn_swiglu.1} parent=0 // pred_check
    _
  $region31: #{ffn_swiglu.1} parent=0 // pred_check_branch
    %682 = sbr.rel (0) target = $region33
  $region32: #{ffn_swiglu.1} parent=0 // pred_region
    _
  $region33: #{ffn_swiglu.1} parent=0 // pred_fallthru
    _
  // Predicated region
  $region34: #{ffn_swiglu.1} parent=0 // pred_check
    _
  $region35: #{ffn_swiglu.1} parent=0 // pred_check_branch
    %684 = sbr.rel (0) target = $region37
  $region36: #{ffn_swiglu.1} parent=0 // pred_region
    _
  $region37: #{ffn_swiglu.1} parent=0 // pred_fallthru
    _

</llo_original>
